<compile_context>
chip_gen: v7x
topology: tpu7x:2x2x1
jax: 0.10.0
libtpu: 0.0.40
codegen_flags: <defaults>
</compile_context>

<pallas_src>
import jax
import jax.numpy as jnp
import numpy as np
from jax.experimental import pallas as pl
from jax.experimental.pallas import tpu as pltpu


def _round_up(a, b):
    return (a + b - 1) // b * b


def _vmem_budget_bytes():
    # Conservative cross-generation default (fits v7x's 64 MiB/TC with headroom);
    # raised only when the hardware query confirms a 128 MiB-class VMEM (v5e/v6e).
    budget = 48 * 1024 * 1024
    try:
        cap = int(getattr(pltpu.get_tpu_info(), "vmem_capacity_bytes", 0))
        if cap >= 128 * 1024 * 1024:
            budget = 96 * 1024 * 1024
    except Exception:
        pass
    return budget


# ----------------------------- Pallas kernels ------------------------------ #

def router_kernel(x_ref, w_ref, b_ref, o_ref):
    # (tile_r, H) @ (H, E_pad) + (1, E_pad), f32 for stable top-k selection.
    # E is padded to 128 lanes so the output store path is lane-dense.
    o_ref[...] = (
        jnp.dot(x_ref[...], w_ref[...], preferred_element_type=jnp.float32)
        + b_ref[...]
    )


def moe_grouped_kernel(eid_ref, valid_ref, x_ref, rw_ref, wg_ref, wu_ref, wd_ref,
                       o_ref, acc_ref):
    """Grouped expert kernel. Grid = (num_token_tiles, num_i_chunks).

    Every token tile contains rows routed to a single expert (tokens were sorted and
    bucketed per expert on the host, groups padded to tile_n multiples).  The tile's
    expert id (eid_ref, SMEM 1-D) selects which expert's weight chunks are streamed via
    the BlockSpec index_maps.  The I axis is a reduction into the f32 accumulator.

    x_ref:  (tile_n, H) bf16 gathered tokens
    rw_ref: (tile_n, 1) f32 routing weights (1.0 shared group, 0.0 padding rows)
    wg/wu:  (1, H, tile_i) bf16    wd: (1, tile_i, H) bf16
    """
    t = pl.program_id(0)
    j = pl.program_id(1)

    @pl.when(j == 0)
    def _init():
        acc_ref[...] = jnp.zeros_like(acc_ref)

    @pl.when(valid_ref[t] > 0)
    def _compute():
        x = x_ref[...]
        g = jnp.dot(x, wg_ref[0], preferred_element_type=jnp.float32)
        u = jnp.dot(x, wu_ref[0], preferred_element_type=jnp.float32)
        h = (g * jax.nn.sigmoid(g)) * u                      # silu(g) * u, f32
        acc_ref[...] += jnp.dot(h.astype(wd_ref.dtype), wd_ref[0],
                                preferred_element_type=jnp.float32)

    @pl.when(j == pl.num_programs(1) - 1)
    def _finalize():
        # Routing weight applied once in the epilogue (0 for pad rows -> exact zeros).
        o_ref[...] = (acc_ref[...] * rw_ref[...]).astype(o_ref.dtype)


# ------------------------------ Python wrapper ------------------------------ #

def moe_forward(x, params, top_k, *, tile_n_max=256, tile_i_max=512,
                compute_dtype=jnp.bfloat16):
    B, S, H = x.shape
    N = B * S
    E = params["router_w"].shape[1]
    I_e = params["wg"].shape[-1]
    I_s = params["sg"].shape[-1]
    I_common = max(I_e, I_s)

    # ---- tile sizes (bf16-aware: multiples of 16 rows; I chunks multiples of 128) ----
    tile_n_max = max(16, _round_up(tile_n_max, 16))
    tile_n = min(tile_n_max, _round_up(N, 16))
    tile_i_max = max(128, (tile_i_max // 128) * 128)
    tile_i = min(tile_i_max, _round_up(I_common, 128))

    out_itemsize = jnp.dtype(x.dtype).itemsize
    bf = jnp.dtype(compute_dtype).itemsize
    budget = _vmem_budget_bytes()

    def _est(tn, ti):
        return (2 * tn * H * bf            # x tile (double-buffered)
                + 2 * tn * 128 * 4         # rw column (lane-padded VMEM footprint)
                + 3 * 2 * H * ti * bf      # wg/wu/wd chunks (double-buffered)
                + 2 * tn * H * out_itemsize
                + tn * H * 4)              # f32 accumulator

    target = (budget * 4) // 5
    while _est(tile_n, tile_i) > target and (tile_i > 128 or tile_n > 64):
        if tile_i > 128:
            tile_i = max(128, (tile_i // 2) // 128 * 128)
        else:
            tile_n = max(64, (tile_n // 2) // 16 * 16)
    I_pad = _round_up(I_common, tile_i)
    num_i = I_pad // tile_i
    vmem_limit = int(min(budget, max(32 * 1024 * 1024, 2 * _est(tile_n, tile_i))))

    x_flat = x.reshape(N, H)

    # ---------------- Router (Pallas, f32, lane-dense E padded to 128) ----------------
    E_pad = _round_up(E, 128)
    tile_r = min(512, _round_up(N, 8))
    N_r = _round_up(N, tile_r)
    x_r = jnp.pad(x_flat.astype(jnp.float32), ((0, N_r - N), (0, 0)))
    wr = jnp.pad(params["router_w"].astype(jnp.float32), ((0, 0), (0, E_pad - E)))
    br = jnp.pad(params["expert_bias"].astype(jnp.float32).reshape(1, E),
                 ((0, 0), (0, E_pad - E)))

    logits = pl.pallas_call(
        router_kernel,
        out_shape=jax.ShapeDtypeStruct((N_r, E_pad), jnp.float32),
        grid_spec=pltpu.PrefetchScalarGridSpec(
            num_scalar_prefetch=0,
            grid=(N_r // tile_r,),
            in_specs=[
                pl.BlockSpec((tile_r, H), lambda i: (i, 0)),
                pl.BlockSpec((H, E_pad), lambda i: (0, 0)),
                pl.BlockSpec((1, E_pad), lambda i: (0, 0)),
            ],
            out_specs=pl.BlockSpec((tile_r, E_pad), lambda i: (i, 0)),
        ),
        compiler_params=pltpu.CompilerParams(
            dimension_semantics=("parallel",)),
    )(x_r, wr, br)[:N, :E]

    # ---------------- Top-k routing + grouping metadata (small JAX glue) ----------------
    # Softmax over the bias-augmented top-k logits (matches the PyTorch module).
    top_vals, top_idx = jax.lax.top_k(logits, top_k)          # (N, K)
    top_w = jax.nn.softmax(top_vals, axis=-1)                 # (N, K)

    K = top_k
    A = N * K
    expert_ids = top_idx.reshape(-1).astype(jnp.int32)        # (A,) row-major: token-major
    token_ids = jnp.repeat(jnp.arange(N, dtype=jnp.int32), K)
    assign_w = top_w.reshape(-1).astype(jnp.float32)

    order = jnp.argsort(expert_ids)                           # bucket assignments by expert
    # Shared expert appended as group E: all tokens, weight 1.0.
    sorted_tok = jnp.concatenate([token_ids[order], jnp.arange(N, dtype=jnp.int32)])
    sorted_w = jnp.concatenate([assign_w[order], jnp.ones((N,), jnp.float32)])
    sorted_gid = jnp.concatenate([expert_ids[order], jnp.full((N,), E, jnp.int32)])

    counts = jnp.concatenate([
        jnp.bincount(expert_ids, length=E).astype(jnp.int32),
        jnp.array([N], jnp.int32)])                           # (E+1,)

    tiles_per_group = (counts + tile_n - 1) // tile_n
    cum_tiles = jnp.cumsum(tiles_per_group)                   # inclusive
    group_tile_start = cum_tiles - tiles_per_group
    group_row_start = group_tile_start * tile_n
    group_pos_start = jnp.cumsum(counts) - counts             # exclusive cumsum in sorted list

    # Static worst-case tile count: each routed group adds < 1 tile of padding.
    num_tiles = A // tile_n + E + pl.cdiv(N, tile_n)
    M_pad = num_tiles * tile_n

    pos = jnp.arange(A + N, dtype=jnp.int32)
    dest_row = group_row_start[sorted_gid] + (pos - group_pos_start[sorted_gid])

    gather_idx = jnp.zeros((M_pad,), jnp.int32).at[dest_row].set(sorted_tok)
    rw_sorted = jnp.zeros((M_pad, 1), jnp.float32).at[dest_row, 0].set(sorted_w)
    x_sorted = x_flat.astype(compute_dtype)[gather_idx]       # (M_pad, H) bf16, one gather

    tile_ids = jnp.arange(num_tiles, dtype=jnp.int32)
    tile_gid = jnp.minimum(
        jnp.searchsorted(cum_tiles, tile_ids, side="right"), E).astype(jnp.int32)
    tile_valid = (tile_ids < cum_tiles[-1]).astype(jnp.int32)

    # ---- Stacked expert + shared weights, zero-padded to I_pad (exact for SwiGLU) ----
    def _pad_i(w, axis):
        pad = [(0, 0)] * w.ndim
        pad[axis] = (0, I_pad - w.shape[axis])
        return jnp.pad(w, pad)

    wg_all = jnp.concatenate([_pad_i(params["wg"], 2),
                              _pad_i(params["sg"], 1)[None]], axis=0).astype(compute_dtype)
    wu_all = jnp.concatenate([_pad_i(params["wu"], 2),
                              _pad_i(params["su"], 1)[None]], axis=0).astype(compute_dtype)
    wd_all = jnp.concatenate([_pad_i(params["wd"], 1),
                              _pad_i(params["sd"], 0)[None]], axis=0).astype(compute_dtype)

    # ---------------- Grouped expert compute (Pallas) ----------------
    def _x_map(t, j, eid, valid):
        return (t, 0)

    def _rw_map(t, j, eid, valid):
        return (t, 0)

    def _wgu_map(t, j, eid, valid):
        # Invalid (padding) tiles freeze the chunk index -> no extra weight DMA.
        jj = jnp.where(valid[t] > 0, j, num_i - 1)
        return (eid[t], 0, jj)

    def _wd_map(t, j, eid, valid):
        jj = jnp.where(valid[t] > 0, j, num_i - 1)
        return (eid[t], jj, 0)

    def _out_map(t, j, eid, valid):
        return (t, 0)

    out_sorted = pl.pallas_call(
        moe_grouped_kernel,
        out_shape=jax.ShapeDtypeStruct((M_pad, H), x.dtype),
        grid_spec=pltpu.PrefetchScalarGridSpec(
            num_scalar_prefetch=2,                       # tile_gid, tile_valid -> 1-D SMEM
            grid=(num_tiles, num_i),
            in_specs=[
                pl.BlockSpec((tile_n, H), _x_map),       # gathered tokens (bf16)
                pl.BlockSpec((tile_n, 1), _rw_map),      # per-row routing weight
                pl.BlockSpec((1, H, tile_i), _wgu_map),  # gate chunk of expert eid[t]
                pl.BlockSpec((1, H, tile_i), _wgu_map),  # up   chunk of expert eid[t]
                pl.BlockSpec((1, tile_i, H), _wd_map),   # down chunk of expert eid[t]
            ],
            out_specs=pl.BlockSpec((tile_n, H), _out_map),
            scratch_shapes=[pltpu.VMEM((tile_n, H), jnp.float32)],
        ),
        compiler_params=pltpu.CompilerParams(
            dimension_semantics=("parallel", "arbitrary"),
            vmem_limit_bytes=vmem_limit,
        ),
    )(tile_gid, tile_valid, x_sorted, rw_sorted, wg_all, wu_all, wd_all)

    # Scatter-add back to token order (pad rows are exact zeros -> harmless add to row 0).
    out = jnp.zeros((N, H), dtype=out_sorted.dtype).at[gather_idx].add(out_sorted)
    return out.reshape(B, S, H).astype(x.dtype)


# ------------------------------ Pure-JAX reference --------------------------- #

def ref_forward(x, params, top_k, compute_dtype=jnp.bfloat16):
    """Same semantics as the PyTorch module, with matching bf16 MXU-operand rounding."""
    B, S, H = x.shape
    x_flat = x.reshape(-1, H).astype(jnp.float32)
    E = params["router_w"].shape[1]
    logits = x_flat @ params["router_w"] + params["expert_bias"].reshape(1, E)
    top_vals, top_idx = jax.lax.top_k(logits, top_k)
    top_w = jax.nn.softmax(top_vals, axis=-1)
    rw = jnp.sum(top_w[..., None] * jax.nn.one_hot(top_idx, E, dtype=jnp.float32), axis=1)

    xc = x_flat.astype(compute_dtype)

    def swiglu(wg, wu, wd):
        g = jnp.dot(xc, wg.astype(compute_dtype), preferred_element_type=jnp.float32)
        u = jnp.dot(xc, wu.astype(compute_dtype), preferred_element_type=jnp.float32)
        h = (g * jax.nn.sigmoid(g)) * u
        return jnp.dot(h.astype(compute_dtype), wd.astype(compute_dtype),
                       preferred_element_type=jnp.float32)

    out = jnp.zeros_like(x_flat)
    for e in range(E):
        out = out + rw[:, e:e + 1] * swiglu(params["wg"][e], params["wu"][e], params["wd"][e])
    out = out + swiglu(params["sg"], params["su"], params["sd"])
    return out.reshape(B, S, H).astype(x.dtype)


# ---------------------------------- main ------------------------------------ #

if __name__ == "__main__":
    B, S = 2, 8
    n_embd = 32
    n_experts = 4
    top_k = 2
    expert_intermediate = 256     # > 128 so the I-chunk reduction axis is exercised
    shared_intermediate = 192     # != expert size so the zero-padding path is exercised

    key = jax.random.PRNGKey(0)
    ks = jax.random.split(key, 9)
    scale = 0.02
    params = {
        "router_w": scale * jax.random.normal(ks[0], (n_embd, n_experts), jnp.float32),
        # expert_bias is a zeros buffer in the module; small values exercise the add.
        "expert_bias": 0.01 * jax.random.normal(ks[8], (n_experts,), jnp.float32),
        "wg": scale * jax.random.normal(ks[1], (n_experts, n_embd, expert_intermediate), jnp.float32),
        "wu": scale * jax.random.normal(ks[2], (n_experts, n_embd, expert_intermediate), jnp.float32),
        "wd": scale * jax.random.normal(ks[3], (n_experts, expert_intermediate, n_embd), jnp.float32),
        "sg": scale * jax.random.normal(ks[4], (n_embd, shared_intermediate), jnp.float32),
        "su": scale * jax.random.normal(ks[5], (n_embd, shared_intermediate), jnp.float32),
        "sd": scale * jax.random.normal(ks[6], (shared_intermediate, n_embd), jnp.float32),
    }
    x = jax.random.normal(ks[7], (B, S, n_embd), jnp.float32)

    # Small tiles so the grouped path uses multiple token tiles and 2 I-chunks at toy size.
    out = moe_forward(x, params, top_k, tile_n_max=16, tile_i_max=128)
    out = jax.block_until_ready(out)

    ref = jax.block_until_ready(ref_forward(x, params, top_k))
    np.testing.assert_allclose(np.asarray(out), np.asarray(ref), rtol=1e-3, atol=1e-5)

    print("KERNEL_OK")
</pallas_src>

<mosaic_0001>
module attributes {stable_mosaic.version = 11 : i64} {
  func.func @router_kernel(%arg0: i32, %arg1: memref<16x32xf32, #tpu.memory_space<vmem>>, %arg2: memref<32x128xf32, #tpu.memory_space<vmem>>, %arg3: memref<1x128xf32, #tpu.memory_space<vmem>>, %arg4: memref<16x128xf32, #tpu.memory_space<vmem>>) attributes {dimension_semantics = [#tpu.dimension_semantics<parallel>], iteration_bounds = array<i64: 1>, scalar_prefetch = 0 : i64, scratch_operands = 0 : i64, tpu.core_type = #tpu.core_type<tc>, window_params = [{transform_indices = @transform_0, window_bounds = array<i64: 16, 32>}, {pipeline_mode = #tpu.pipeline_mode<synchronous>, transform_indices = @transform_1, window_bounds = array<i64: 32, 128>}, {pipeline_mode = #tpu.pipeline_mode<synchronous>, transform_indices = @transform_2, window_bounds = array<i64: 1, 128>}, {transform_indices = @transform_3, window_bounds = array<i64: 16, 128>}]} {
    %c0 = arith.constant 0 : index
    %c0_0 = arith.constant 0 : index
    %0 = vector.load %arg1[%c0, %c0_0] : memref<16x32xf32, #tpu.memory_space<vmem>>, vector<16x32xf32>
    %c0_1 = arith.constant 0 : index
    %c0_2 = arith.constant 0 : index
    %1 = vector.load %arg2[%c0_1, %c0_2] : memref<32x128xf32, #tpu.memory_space<vmem>>, vector<32x128xf32>
    %cst = arith.constant dense<0.000000e+00> : vector<16x128xf32>
    %2 = tpu.matmul %0, %1, %cst {dimension_numbers = #tpu.dot_dimension_numbers<[1], [0], [0], [1], [0, 0, 1, 1], [], []>} : vector<16x32xf32>, vector<32x128xf32>, vector<16x128xf32> -> vector<16x128xf32>
    %c0_3 = arith.constant 0 : index
    %c0_4 = arith.constant 0 : index
    %3 = vector.load %arg3[%c0_3, %c0_4] : memref<1x128xf32, #tpu.memory_space<vmem>>, vector<1x128xf32>
    %4 = vector.broadcast %3 : vector<1x128xf32> to vector<16x128xf32>
    %5 = arith.addf %2, %4 : vector<16x128xf32>
    %c0_5 = arith.constant 0 : index
    %c0_6 = arith.constant 0 : index
    %6 = vector.load %arg4[%c0_5, %c0_6] : memref<16x128xf32, #tpu.memory_space<vmem>>, vector<16x128xf32>
    tpu.vector_store %arg4[%c0_5, %c0_6], %5 {strides = array<i32>} : memref<16x128xf32, #tpu.memory_space<vmem>>, vector<16x128xf32>,
    return
  }
  func.func @transform_0(%arg0: i32) -> (i32, i32) {
    %c0_i32 = arith.constant 0 : i32
    %c0_i32_0 = arith.constant 0 : i32
    return %arg0, %c0_i32 : i32, i32
  }
  func.func @transform_1(%arg0: i32) -> (i32, i32) {
    %c0_i32 = arith.constant 0 : i32
    %c0_i32_0 = arith.constant 0 : i32
    %c0_i32_1 = arith.constant 0 : i32
    return %c0_i32, %c0_i32_0 : i32, i32
  }
  func.func @transform_2(%arg0: i32) -> (i32, i32) {
    %c0_i32 = arith.constant 0 : i32
    %c0_i32_0 = arith.constant 0 : i32
    %c0_i32_1 = arith.constant 0 : i32
    return %c0_i32, %c0_i32_0 : i32, i32
  }
  func.func @transform_3(%arg0: i32) -> (i32, i32) {
    %c0_i32 = arith.constant 0 : i32
    %c0_i32_0 = arith.constant 0 : i32
    return %arg0, %c0_i32 : i32, i32
  }
}

</mosaic_0001>

<llo_original>
// kernel: tpu_custom_call.1
$region0: #{tpu_custom_call.1}
  #allocation0 [shape = 'u32[]', space=smem, size = 0x4, offset = 0x4, fixed_abs, tag = 'smem constant byte address 0x4 - core index']
  #allocation1 [shape = 'u32[144,128]{1,0:T(1,128)}', space=vmem, size = 0x12000, scoped, tag = 'internal scratch']
  %s0 = inlined_call_operand.hbm [shape: f32[16,32], index: 0, kind: input, shape index: {}]
  %s1 = inlined_call_operand.hbm [shape: f32[32,128], index: 1, kind: input, shape index: {}]
  %s2 = inlined_call_operand.vmem [shape: f32[1,128], index: 2, kind: input, shape index: {}]
  %s3 = inlined_call_operand.hbm [shape: f32[16,128], index: 3, kind: output, shape index: {}]
  %s4 = sld [smem:[#allocation0]]
  $region30: #{tpu_custom_call.1} parent=0
    _
  %s6 = ssub.s32 1, %s4
  %s7 = scalar_select 0, %s6, %s4
  $region1: #{tpu_custom_call.1} parent=0
    #allocation2 [shape = 'u8[8192]{0}', space=vmem, size = 0x2000, scoped, tag = 'input window, operand 0, single buffered']
    #allocation3 [shape = 's32[1]{0}', space=sflag, size = 0x4, scoped, tag = 'scoped memory for tpu_custom_call.1']
    #allocation4 [shape = 's32[1]{0}', space=sflag, size = 0x4, scoped, tag = 'scoped memory for tpu_custom_call.1']
    #allocation5 [shape = 'u8[16384]{0}', space=vmem, size = 0x4000, scoped, tag = 'input window, operand 1, single buffered']
    #allocation6 [shape = 's32[1]{0}', space=sflag, size = 0x4, scoped, tag = 'scoped memory for tpu_custom_call.1']
    #allocation7 [shape = 'u8[8192]{0}', space=vmem, size = 0x2000, scoped, tag = 'output window, operand 0, single buffered']
    %8 = vsyncpa [#allocation3], 0
    %9 = vsyncpa [#allocation6], 0
    %10 = vsyncpa [#allocation4], 0
    // Predicated region
    $region2: #{tpu_custom_call.1} parent=1 // pred_check
      _
    $region3: #{tpu_custom_call.1} parent=1 // pred_check_branch
      %12 = sbr.rel (0) target = $region5
    $region4: #{tpu_custom_call.1} parent=1 // pred_region
      %s14 = ssub.s32 256, 256
      %15 = vsyncadd [#allocation3], %s14
      %s16 = sshll.u32 [#allocation2], 4
      %s17 = int_to_ptr.vmem [resolvable:$true] %s16
      %22 = dma.hbm_to_vmem [thread:$0]  %s0, 256, %s17, [#allocation3], 128, 128, 8
    $region5: #{tpu_custom_call.1} parent=1 // pred_fallthru
      _
    // Predicated region
    $region6: #{tpu_custom_call.1} parent=1 // pred_check
      _
    $region7: #{tpu_custom_call.1} parent=1 // pred_check_branch
      %24 = sbr.rel (0) target = $region9
    $region8: #{tpu_custom_call.1} parent=1 // pred_region
      %s26 = ssub.s32 512, 512
      %27 = vsyncadd [#allocation6], %s26
      %s28 = sshll.u32 [#allocation5], 4
      %s29 = int_to_ptr.vmem [resolvable:$true] %s28
      %34 = dma.hbm_to_vmem [thread:$0]  %s1, 512, %s29, [#allocation6], 128, 128, 8
    $region9: #{tpu_custom_call.1} parent=1 // pred_fallthru
      _
    // Predicated region
    $region10: #{tpu_custom_call.1} parent=1 // pred_check
      _
    $region11: #{tpu_custom_call.1} parent=1 // pred_check_branch
      %36 = sbr.rel (0) target = $region13
    $region12: #{tpu_custom_call.1} parent=1 // pred_region
      _
    $region13: #{tpu_custom_call.1} parent=1 // pred_fallthru
      _
    // Predicated region
    $region14: #{tpu_custom_call.1} parent=1 // pred_check
      _
    $region15: #{tpu_custom_call.1} parent=1 // pred_check_branch
      %38 = sbr.rel (0) target = $region17
    $region16: #{tpu_custom_call.1} parent=1 // pred_region
      %39 = dma.done [#allocation3], 256
    $region17: #{tpu_custom_call.1} parent=1 // pred_fallthru
      _
    // Predicated region
    $region18: #{tpu_custom_call.1} parent=1 // pred_check
      _
    $region19: #{tpu_custom_call.1} parent=1 // pred_check_branch
      %41 = sbr.rel (0) target = $region21
    $region20: #{tpu_custom_call.1} parent=1 // pred_region
      %42 = dma.done [#allocation6], 512
    $region21: #{tpu_custom_call.1} parent=1 // pred_fallthru
      _
    %v43 = vld [vmem:[#allocation2] sm:$0xff]
    %v44 = vld [vmem:[#allocation2 + $0x8] sm:$0xff]
    %v45 = vld [vmem:[#allocation5] sm:$0xff]
    %v46 = vld [vmem:[#allocation5 + $0x8] sm:$0xff]
    %v47 = vld [vmem:[#allocation5 + $0x10] sm:$0xff]
    %v48 = vld [vmem:[#allocation5 + $0x18] sm:$0xff]
    %v49 = vld [vmem:[%s2] sm:$0x1]
    %v51 = vlaneseq
    %v52 = vshrl.u32 %v51, 7
    %v53 = vsub.s32 0, %v52
    %v54 = vrot.slane %v49, %v53
    %vm56 = vcmask 261120
    %v58 = vsel %vm56, %v43, 0
    %v61 = vsel %vm56, %v44, 0
    %63 = vmatprep.subr.mxu0 0.0
    %64 = vmatpush1.msra.mxu0 %v45
    %65 = vmatprep.subr.mxu0 0.0
    %66 = vmatpush1.msra.mxu0 %v46
    %67 = vmatprep.subr.mxu0 0.0
    %68 = vmatpush1.msra.mxu0 %v47
    %69 = vmatprep.subr.mxu0 0.0
    %70 = vmatpush1.msra.mxu0 %v48
    %71 = vmatprep.subr.mxu0 0.0
    %72 = vmatpush1.msra.mxu0 0.0
    %73 = vmatprep.subr.mxu0 0.0
    %74 = vmatpush1.msra.mxu0 0.0
    %75 = vmatprep.subr.mxu0 0.0
    %76 = vmatpush1.msra.mxu0 0.0
    %77 = vmatprep.subr.mxu0 0.0
    %78 = vmatpush1.msra.mxu0 0.0
    %79 = vmatprep.subr.mxu0 0.0
    %80 = vmatpush1.msra.mxu0 0.0
    %81 = vmatprep.subr.mxu0 0.0
    %82 = vmatpush1.msra.mxu0 0.0
    %83 = vmatprep.subr.mxu0 0.0
    %84 = vmatpush1.msra.mxu0 0.0
    %85 = vmatprep.subr.mxu0 0.0
    %86 = vmatpush1.msra.mxu0 0.0
    %87 = vmatprep.subr.mxu0 0.0
    %88 = vmatpush1.msra.mxu0 0.0
    %89 = vmatprep.subr.mxu0 0.0
    %90 = vmatpush1.msra.mxu0 0.0
    %91 = vmatprep.subr.mxu0 0.0
    %92 = vmatpush1.msra.mxu0 0.0
    %93 = vmatprep.subr.mxu0 0.0
    %94 = vmatpush1.msra.mxu0 0.0
    %95 = vmatprep.subr.mxu0 0.0
    %96 = vmatpush1.msra.mxu0 0.0
    %97 = vmatprep.subr.mxu0 0.0
    %98 = vmatpush1.msra.mxu0 0.0
    %99 = vmatprep.subr.mxu0 0.0
    %100 = vmatpush1.msra.mxu0 0.0
    %101 = vmatprep.subr.mxu0 0.0
    %102 = vmatpush1.msra.mxu0 0.0
    %103 = vmatprep.subr.mxu0 0.0
    %104 = vmatpush1.msra.mxu0 0.0
    %105 = vmatprep.subr.mxu0 0.0
    %106 = vmatpush1.msra.mxu0 0.0
    %107 = vmatprep.subr.mxu0 0.0
    %108 = vmatpush1.msra.mxu0 0.0
    %109 = vmatprep.subr.mxu0 0.0
    %110 = vmatpush1.msra.mxu0 0.0
    %111 = vmatprep.subr.mxu0 0.0
    %112 = vmatpush1.msra.mxu0 0.0
    %113 = vmatprep.subr.mxu0 0.0
    %114 = vmatpush1.msra.mxu0 0.0
    %115 = vmatprep.subr.mxu0 0.0
    %116 = vmatpush1.msra.mxu0 0.0
    %117 = vmatprep.subr.mxu0 0.0
    %118 = vmatpush1.msra.mxu0 0.0
    %119 = vmatprep.subr.mxu0 0.0
    %120 = vmatpush1.msra.mxu0 0.0
    %121 = vmatprep.subr.mxu0 0.0
    %122 = vmatpush1.msra.mxu0 0.0
    %123 = vmatprep.subr.mxu0 0.0
    %124 = vmatpush1.msra.mxu0 0.0
    %125 = vmatprep.subr.mxu0 0.0
    %126 = vmatpush1.msra.mxu0 0.0
    %127 = vmatprep.mubr.f32.mxu0 0.0
    %128 = vmatmul.mubr.f32.gmra.mrb[0].mxu0 %v58
    %v129 = vpop.f32.mrb[0].mxu0
    %v130 = vadd.f32 %v54, %v129
    %v131 = vpop.f32.mrb[0].mxu0
    %132 = vmatprep.mubr.f32.mxu0 0.0
    %133 = vmatmul.mubr.f32.gmra.mrb[0].mxu0 %v61
    %v134 = vpop.f32.mrb[0].mxu0
    %v135 = vadd.f32 %v54, %v134
    %v136 = vpop.f32.mrb[0].mxu0
    %137 = vdwg.mxu0
    %138 = vst [vmem:[#allocation7] sm:$0xff] %v130
    %139 = vst [vmem:[#allocation7 + $0x8] sm:$0xff] %v135
    // Predicated region
    $region22: #{tpu_custom_call.1} parent=1 // pred_check
      _
    $region23: #{tpu_custom_call.1} parent=1 // pred_check_branch
      %141 = sbr.rel (0) target = $region25
    $region24: #{tpu_custom_call.1} parent=1 // pred_region
      %s143 = ssub.s32 256, 256
      %144 = vsyncadd [#allocation4], %s143
      %s145 = sshll.u32 [#allocation7], 4
      %s146 = int_to_ptr.vmem [resolvable:$true] %s145
      %151 = dma.vmem_to_hbm [thread:$0]  %s146, 256, %s3, [#allocation4], 128, 128, 8
    $region25: #{tpu_custom_call.1} parent=1 // pred_fallthru
      _
    // Predicated region
    $region26: #{tpu_custom_call.1} parent=1 // pred_check
      _
    $region27: #{tpu_custom_call.1} parent=1 // pred_check_branch
      %153 = sbr.rel (0) target = $region29
    $region28: #{tpu_custom_call.1} parent=1 // pred_region
      %154 = dma.done [#allocation4], 256
    $region29: #{tpu_custom_call.1} parent=1 // pred_fallthru
      _
    %155 = vsyncpa [#allocation3], 1
    %156 = vsyncpa [#allocation6], 1
    %157 = vsyncpa [#allocation4], 1

</llo_original>
